<compile_context>
chip_gen: v7x
topology: tpu7x:2x2x1
jax: 0.10.0
libtpu: 0.0.40
codegen_flags: <defaults>
</compile_context>

<pallas_src>
import functools
import math

import jax
import jax.numpy as jnp
from jax import lax
from jax.experimental import pallas as pl
from jax.experimental.pallas import tpu as pltpu

_LOG2 = math.log(2.0)
_SQRT_2_OVER_PI = math.sqrt(2.0 / math.pi)
_LANE = 128
_TARGET_TILE_BYTES = 4 << 20     # ~4 MiB logits tile: good on v5e/v6e/v7x
_VMEM_CAP = 48 << 20             # headroom under v7x's 64 MiB physical VMEM


def _round_up(x, m):
    return ((x + m - 1) // m) * m


# ---------------------------------------------------------------------------
# Kernel 1: weighted cross-entropy (loss_labels / _compute_ce_loss)
# ---------------------------------------------------------------------------

def _ce_lane_major_kernel(logits_ref, tgt_ref, w_ref, out_ref, *,
                          n_valid, lane_tile):
    """Classes on sublanes, rows on lanes (lane-dense when C is small)."""
    i = pl.program_id(0)
    logits = logits_ref[...].astype(jnp.float32)        # (C, L)
    tgt = tgt_ref[...]                                  # (1, L) int32
    w = w_ref[...].astype(jnp.float32)                  # (C, 1) resident

    # numerically stable logsumexp over the class (sublane) axis
    cmax = jnp.max(logits, axis=0, keepdims=True)
    lse = cmax + jnp.log(jnp.sum(jnp.exp(logits - cmax), axis=0, keepdims=True))

    cls = lax.broadcasted_iota(jnp.int32, logits.shape, 0)
    onehot = cls == tgt
    tgt_logit = jnp.sum(jnp.where(onehot, logits, 0.0), axis=0, keepdims=True)
    w_col = jnp.sum(jnp.where(onehot, w, 0.0), axis=0, keepdims=True)
    per_col = w_col * (lse - tgt_logit)                 # (1, L)

    # tail masking BEFORE the reduction: garbage from the padded DMA region
    # of a partial last tile never reaches the partial sum.
    col_ids = i * lane_tile + lax.broadcasted_iota(jnp.int32, per_col.shape, 1)
    masked = jnp.where(col_ids < n_valid, per_col, 0.0)
    # lane-dense per-tile partial sum (unmasked vst, no (N,1) output stream)
    out_ref[...] = jnp.full((1, _LANE), jnp.sum(masked), jnp.float32)


def _ce_row_major_kernel(logits_ref, tgt_ref, w_ref, out_ref, *,
                         n_valid, row_tile):
    """Rows on sublanes, classes on lanes (used when C >= 128)."""
    i = pl.program_id(0)
    logits = logits_ref[...].astype(jnp.float32)        # (TM, C)
    tgt = tgt_ref[...]                                  # (TM, 1) int32
    w = w_ref[...].astype(jnp.float32)                  # (1, C) resident

    rmax = jnp.max(logits, axis=-1, keepdims=True)
    lse = rmax + jnp.log(jnp.sum(jnp.exp(logits - rmax), axis=-1, keepdims=True))

    col = lax.broadcasted_iota(jnp.int32, logits.shape, 1)
    onehot = col == tgt
    tgt_logit = jnp.sum(jnp.where(onehot, logits, 0.0), axis=-1, keepdims=True)
    w_row = jnp.sum(jnp.where(onehot, w, 0.0), axis=-1, keepdims=True)
    per_row = w_row * (lse - tgt_logit)                 # (TM, 1)

    row_ids = i * row_tile + lax.broadcasted_iota(jnp.int32, per_row.shape, 0)
    masked = jnp.where(row_ids < n_valid, per_row, 0.0)
    out_ref[...] = jnp.full((1, _LANE), jnp.sum(masked), jnp.float32)


def _choose_lane_tile(n, c, itemsize):
    """Lane-tile for the transposed (C, N) layout."""
    if n <= _LANE:
        return n, 1                                    # single full tile
    bytes_per_col = max(1, c * itemsize)
    t = max(_LANE, (_TARGET_TILE_BYTES // bytes_per_col) // _LANE * _LANE)
    # at least 2 grid steps so v7x's two TensorCores can both be used
    half = _round_up(max(_LANE, (n + 1) // 2), _LANE)
    t = min(t, half)
    return t, pl.cdiv(n, t)


def _choose_row_tile(n_rows, c, itemsize):
    """Row-tile for the (N, C) layout (C >= 128)."""
    row_align = 8 * max(1, 4 // max(1, itemsize))       # 8 f32 / 16 bf16 / 32 int8
    if n_rows <= row_align:
        return n_rows, 1
    # count the 128-lane padded (row_tile, 1) target stream in the budget
    bytes_per_row = c * itemsize + _LANE * 4
    t = max(row_align,
            (_TARGET_TILE_BYTES // bytes_per_row) // row_align * row_align)
    half = _round_up(max(row_align, (n_rows + 1) // 2), row_align)
    t = min(t, half)
    return t, pl.cdiv(n_rows, t)


def weighted_cross_entropy_mean(logits, targets, class_weight):
    """mean_i  w[y_i] * (logsumexp(x_i) - x_i[y_i]),  logits: (N, C).

    NOTE: divides by N (reduction='none' followed by .mean()), matching the
    PyTorch module; this differs from F.cross_entropy(reduction='mean') with
    weights (which divides by sum of weights).
    """
    n_rows, n_cols = logits.shape
    itemsize = logits.dtype.itemsize
    tgt = targets.astype(jnp.int32)
    w = class_weight.astype(jnp.float32)

    if n_cols < _LANE:
        # Lane-dense transposed layout: classes -> sublanes, rows -> lanes.
        lane_tile, num_tiles = _choose_lane_tile(n_rows, n_cols, itemsize)
        c_pad = _round_up(n_cols, 8)
        vmem_need = (2 * (c_pad * lane_tile * itemsize      # logits tile
                          + 8 * lane_tile * 4               # (1, L) targets
                          + 8 * _LANE * 4)                  # (1, 128) output
                     + c_pad * _LANE * 4)                   # (C, 1) weights
        vmem_limit = int(min(_VMEM_CAP, max(32 << 20, 2 * vmem_need)))
        out = pl.pallas_call(
            functools.partial(_ce_lane_major_kernel,
                              n_valid=n_rows, lane_tile=lane_tile),
            out_shape=jax.ShapeDtypeStruct((1, num_tiles * _LANE), jnp.float32),
            grid=(num_tiles,),
            in_specs=[
                pl.BlockSpec((n_cols, lane_tile), lambda i: (0, i)),
                pl.BlockSpec((1, lane_tile), lambda i: (0, i)),
                pl.BlockSpec((n_cols, 1), lambda i: (0, 0)),
            ],
            out_specs=pl.BlockSpec((1, _LANE), lambda i: (0, i)),
            compiler_params=pltpu.CompilerParams(
                dimension_semantics=("parallel",),
                vmem_limit_bytes=vmem_limit),
        )(jnp.transpose(logits), tgt.reshape(1, n_rows), w.reshape(n_cols, 1))
    else:
        row_tile, num_tiles = _choose_row_tile(n_rows, n_cols, itemsize)
        vmem_need = (2 * (row_tile * n_cols * itemsize      # logits tile
                          + row_tile * _LANE * 4            # (TM, 1) targets (padded)
                          + 8 * _LANE * 4)                  # (1, 128) output
                     + 8 * _round_up(n_cols, _LANE) * 4)    # (1, C) weights
        vmem_limit = int(min(_VMEM_CAP, max(32 << 20, 2 * vmem_need)))
        out = pl.pallas_call(
            functools.partial(_ce_row_major_kernel,
                              n_valid=n_rows, row_tile=row_tile),
            out_shape=jax.ShapeDtypeStruct((1, num_tiles * _LANE), jnp.float32),
            grid=(num_tiles,),
            in_specs=[
                pl.BlockSpec((row_tile, n_cols), lambda i: (i, 0)),
                pl.BlockSpec((row_tile, 1), lambda i: (i, 0)),
                pl.BlockSpec((1, n_cols), lambda i: (0, 0)),
            ],
            out_specs=pl.BlockSpec((1, _LANE), lambda i: (0, i)),
            compiler_params=pltpu.CompilerParams(
                dimension_semantics=("parallel",),
                vmem_limit_bytes=vmem_limit),
        )(logits, tgt.reshape(n_rows, 1), w.reshape(1, n_cols))

    per_tile = out.reshape(-1, _LANE)[:, 0]               # one partial per tile
    return jnp.sum(per_tile) / n_rows


# ---------------------------------------------------------------------------
# Kernel 2: fused boundary-BCE + diffusion-VLB (single launch, scalar outputs)
# ---------------------------------------------------------------------------

def _boundary_sum(p_left, p_right, tl, tr, mask):
    p_left = p_left.astype(jnp.float32)
    p_right = p_right.astype(jnp.float32)
    mask = mask.astype(jnp.float32)
    col = lax.broadcasted_iota(jnp.int32, p_left.shape, 1)
    y_left = (col == tl).astype(jnp.float32)              # one-hot targets
    y_right = (col == tr).astype(jnp.float32)

    def bce(p, y):
        log_p = jnp.maximum(jnp.log(p), -100.0)           # torch BCE log clamp
        log_1mp = jnp.maximum(jnp.log(1.0 - p), -100.0)
        return -(y * log_p + (1.0 - y) * log_1mp)

    return jnp.sum((bce(p_left, y_left) + bce(p_right, y_right)) * mask)


def _vlb_mean(tmean, tlv, pmean, plv, x, t):
    tmean = tmean.astype(jnp.float32)
    tlv = tlv.astype(jnp.float32)
    pmean = pmean.astype(jnp.float32)
    plv = plv.astype(jnp.float32)
    x = x.astype(jnp.float32)
    b, k = tmean.shape
    inv_k_log2 = 1.0 / (k * _LOG2)

    # normal_kl, mean over non-batch dims, in bits
    kl = 0.5 * (-1.0 + plv - tlv + jnp.exp(tlv - plv)
                + jnp.square(tmean - pmean) * jnp.exp(-plv))
    kl_b = jnp.sum(kl, axis=-1, keepdims=True) * inv_k_log2            # (B, 1)

    # discretized Gaussian NLL, mean over non-batch dims, in bits
    log_scales = 0.5 * plv
    centered = x - pmean
    inv_stdv = jnp.exp(-log_scales)

    def approx_cdf(v):
        return 0.5 * (1.0 + jnp.tanh(_SQRT_2_OVER_PI * (v + 0.044715 * v * v * v)))

    cdf_plus = approx_cdf(inv_stdv * (centered + 1.0 / 60.0))
    cdf_min = approx_cdf(inv_stdv * (centered - 1.0 / 60.0))
    log_probs = jnp.where(
        x < -0.999, jnp.log(jnp.maximum(cdf_plus, 1e-12)),
        jnp.where(x > 0.999, jnp.log(jnp.maximum(1.0 - cdf_min, 1e-12)),
                  jnp.log(jnp.maximum(cdf_plus - cdf_min, 1e-12))))
    nll_b = jnp.sum(-log_probs, axis=-1, keepdims=True) * inv_k_log2   # (B, 1)

    return jnp.sum(jnp.where(t == 0, nll_b, kl_b)) / b


def _fused_small_kernel(pl_ref, pr_ref, tl_ref, tr_ref, mask_ref,
                        tmean_ref, tlv_ref, pmean_ref, plv_ref, x_ref, t_ref,
                        bsum_ref, vlb_ref):
    bsum_ref[...] = jnp.full(
        (1, _LANE),
        _boundary_sum(pl_ref[...], pr_ref[...], tl_ref[...], tr_ref[...],
                      mask_ref[...]),
        jnp.float32)
    vlb_ref[...] = jnp.full(
        (1, _LANE),
        _vlb_mean(tmean_ref[...], tlv_ref[...], pmean_ref[...], plv_ref[...],
                  x_ref[...], t_ref[...]),
        jnp.float32)


def _boundary_only_kernel(pl_ref, pr_ref, tl_ref, tr_ref, mask_ref, bsum_ref):
    bsum_ref[...] = jnp.full(
        (1, _LANE),
        _boundary_sum(pl_ref[...], pr_ref[...], tl_ref[...], tr_ref[...],
                      mask_ref[...]),
        jnp.float32)


def _vlb_only_kernel(tmean_ref, tlv_ref, pmean_ref, plv_ref, x_ref, t_ref,
                     vlb_ref):
    vlb_ref[...] = jnp.full(
        (1, _LANE),
        _vlb_mean(tmean_ref[...], tlv_ref[...], pmean_ref[...], plv_ref[...],
                  x_ref[...], t_ref[...]),
        jnp.float32)


def fused_boundary_and_vlb(p_left, p_right, tgt_left, tgt_right, token_mask,
                           tmean, tlv, pmean, plv, x, t):
    m = p_left.shape[0]
    b = tmean.shape[0]
    bsum, vmean = pl.pallas_call(
        _fused_small_kernel,
        out_shape=(jax.ShapeDtypeStruct((1, _LANE), jnp.float32),
                   jax.ShapeDtypeStruct((1, _LANE), jnp.float32)),
    )(p_left, p_right,
      tgt_left.reshape(m, 1).astype(jnp.int32),
      tgt_right.reshape(m, 1).astype(jnp.int32),
      token_mask,
      tmean, tlv, pmean, plv, x,
      t.reshape(b, 1).astype(jnp.int32))
    return bsum[0, 0], vmean[0, 0]


def boundary_bce_sum(p_left, p_right, tgt_left, tgt_right, token_mask):
    m = p_left.shape[0]
    out = pl.pallas_call(
        _boundary_only_kernel,
        out_shape=jax.ShapeDtypeStruct((1, _LANE), jnp.float32),
    )(p_left, p_right,
      tgt_left.reshape(m, 1).astype(jnp.int32),
      tgt_right.reshape(m, 1).astype(jnp.int32),
      token_mask)
    return out[0, 0]


def vlb_mean_loss(tmean, tlv, pmean, plv, x, t):
    b = tmean.shape[0]
    out = pl.pallas_call(
        _vlb_only_kernel,
        out_shape=jax.ShapeDtypeStruct((1, _LANE), jnp.float32),
    )(tmean, tlv, pmean, plv, x, t.reshape(b, 1).astype(jnp.int32))
    return out[0, 0]


# ---------------------------------------------------------------------------
# Criterion forward (mirrors AspectDETRCriterion.forward with given indices)
# ---------------------------------------------------------------------------

def _src_permutation_idx(indices):
    batch_idx = jnp.concatenate(
        [jnp.full_like(src, b) for b, (src, _) in enumerate(indices)])
    src_idx = jnp.concatenate([src for src, _ in indices])
    return batch_idx, src_idx


def aspect_detr_criterion_forward(outputs, targets, indices, *,
                                  aspect_type_count, nil_weight,
                                  losses=("labels", "boundary",
                                          "variance_and_mean")):
    # TODO(synk): HungarianMatcher (scipy linear_sum_assignment) has no Pallas
    # equivalent; `indices` must be supplied (as the torch forward allows).
    empty_weight = jnp.ones((aspect_type_count,), jnp.float32).at[0].set(nil_weight)
    num_spans = int(sum(targets["sizes"]))
    batch_idx, src_idx = _src_permutation_idx(indices)

    loss_dict = {}

    if "labels" in losses:
        src_logits = outputs["pred_logits"]                      # (B, Q, C)
        b, q, c = src_logits.shape
        target_classes_o = jnp.concatenate(
            [t[j] for t, (_, j) in zip(targets["labels"], indices)]).astype(jnp.int32)
        target_classes = jnp.zeros((b, q), jnp.int32)
        target_classes = target_classes.at[batch_idx, src_idx].set(target_classes_o)
        loss_dict["loss_ce"] = weighted_cross_entropy_mean(
            src_logits.reshape(b * q, c), target_classes.reshape(-1), empty_weight)

    need_boundary = "boundary" in losses
    need_vlb = "variance_and_mean" in losses

    if need_boundary:
        src_left = outputs["pred_left"][batch_idx, src_idx]       # (M, T)
        src_right = outputs["pred_right"][batch_idx, src_idx]
        token_masks = outputs["token_mask"][batch_idx]            # (M, T)
        tgt_left = jnp.concatenate(
            [t[i] for t, (_, i) in zip(targets["gt_left"], indices)])
        tgt_right = jnp.concatenate(
            [t[i] for t, (_, i) in zip(targets["gt_right"], indices)])

    if need_vlb:
        b, q, _ = outputs["pred_mean"].shape
        left_lv = jnp.mean(outputs["pred_left_log_variance"], axis=2, keepdims=True)
        right_lv = jnp.mean(outputs["pred_right_log_variance"], axis=2, keepdims=True)
        pred_log_variance = jnp.concatenate([left_lv, right_lv], axis=2)   # (B,Q,2)
        true_log_variance = jnp.broadcast_to(
            targets["true_log_variance_clipped"], pred_log_variance.shape)
        k = q * 2
        vlb_inputs = (targets["true_mean"].reshape(b, k),
                      true_log_variance.reshape(b, k),
                      outputs["pred_mean"].reshape(b, k),
                      pred_log_variance.reshape(b, k),
                      outputs["pred_x_start"].reshape(b, k),
                      outputs["t"])

    if need_boundary and need_vlb:
        bsum, vmean = fused_boundary_and_vlb(
            src_left, src_right, tgt_left, tgt_right, token_masks, *vlb_inputs)
        loss_dict["loss_boundary"] = bsum / num_spans
        loss_dict["loss_variance_and_mean"] = vmean
    elif need_boundary:
        loss_dict["loss_boundary"] = boundary_bce_sum(
            src_left, src_right, tgt_left, tgt_right, token_masks) / num_spans
    elif need_vlb:
        loss_dict["loss_variance_and_mean"] = vlb_mean_loss(*vlb_inputs)

    return loss_dict, indices


# ---------------------------------------------------------------------------
# Pure-JAX reference (mirrors the PyTorch math) for verification
# ---------------------------------------------------------------------------

def _reference_losses(outputs, targets, indices, *, aspect_type_count, nil_weight):
    empty_weight = jnp.ones((aspect_type_count,), jnp.float32).at[0].set(nil_weight)
    num_spans = int(sum(targets["sizes"]))
    batch_idx, src_idx = _src_permutation_idx(indices)

    src_logits = outputs["pred_logits"].astype(jnp.float32)
    b, q, _ = src_logits.shape
    target_classes_o = jnp.concatenate(
        [t[j] for t, (_, j) in zip(targets["labels"], indices)]).astype(jnp.int32)
    target_classes = jnp.zeros((b, q), jnp.int32).at[batch_idx, src_idx].set(target_classes_o)
    logp = jax.nn.log_softmax(src_logits, axis=-1)
    nll = -jnp.take_along_axis(logp, target_classes[..., None], axis=-1)[..., 0]
    loss_ce = jnp.mean(empty_weight[target_classes] * nll)

    def bce(p, y):
        return -(y * jnp.maximum(jnp.log(p), -100.0)
                 + (1.0 - y) * jnp.maximum(jnp.log(1.0 - p), -100.0))

    src_left = outputs["pred_left"][batch_idx, src_idx].astype(jnp.float32)
    src_right = outputs["pred_right"][batch_idx, src_idx].astype(jnp.float32)
    token_masks = outputs["token_mask"][batch_idx].astype(jnp.float32)
    tl = jnp.concatenate([t[i] for t, (_, i) in zip(targets["gt_left"], indices)])
    tr = jnp.concatenate([t[i] for t, (_, i) in zip(targets["gt_right"], indices)])
    seq = src_left.shape[1]
    oh_l = jax.nn.one_hot(tl, seq, dtype=jnp.float32)
    oh_r = jax.nn.one_hot(tr, seq, dtype=jnp.float32)
    loss_boundary = jnp.sum((bce(src_left, oh_l) + bce(src_right, oh_r)) * token_masks) / num_spans

    left_lv = jnp.mean(outputs["pred_left_log_variance"], axis=2, keepdims=True)
    right_lv = jnp.mean(outputs["pred_right_log_variance"], axis=2, keepdims=True)
    plv = jnp.concatenate([left_lv, right_lv], axis=2)
    tlv = jnp.broadcast_to(targets["true_log_variance_clipped"], plv.shape)
    tm_, pm = targets["true_mean"], outputs["pred_mean"]
    x = outputs["pred_x_start"]
    kl = 0.5 * (-1.0 + plv - tlv + jnp.exp(tlv - plv) + (tm_ - pm) ** 2 * jnp.exp(-plv))
    kl_b = jnp.mean(kl.reshape(b, -1), axis=1) / _LOG2
    log_scales = 0.5 * plv
    centered = x - pm
    inv_stdv = jnp.exp(-log_scales)

    def approx_cdf(v):
        return 0.5 * (1.0 + jnp.tanh(_SQRT_2_OVER_PI * (v + 0.044715 * v ** 3)))

    cdf_plus = approx_cdf(inv_stdv * (centered + 1.0 / 60.0))
    cdf_min = approx_cdf(inv_stdv * (centered - 1.0 / 60.0))
    log_probs = jnp.where(x < -0.999, jnp.log(jnp.maximum(cdf_plus, 1e-12)),
                          jnp.where(x > 0.999,
                                    jnp.log(jnp.maximum(1.0 - cdf_min, 1e-12)),
                                    jnp.log(jnp.maximum(cdf_plus - cdf_min, 1e-12))))
    nll_b = jnp.mean(-log_probs.reshape(b, -1), axis=1) / _LOG2
    lvm = jnp.mean(jnp.where(outputs["t"] == 0, nll_b, kl_b))

    return {"loss_ce": loss_ce, "loss_boundary": loss_boundary,
            "loss_variance_and_mean": lvm}


if __name__ == "__main__":
    B, Q, T, C = 2, 8, 16, 8
    NIL_WEIGHT = 0.5

    key = jax.random.PRNGKey(0)
    ks = jax.random.split(key, 10)

    outputs = {
        "pred_logits": jax.random.normal(ks[0], (B, Q, C), dtype=jnp.float32),
        "pred_left": jax.nn.softmax(
            jax.random.normal(ks[1], (B, Q, T), dtype=jnp.float32), axis=-1),
        "pred_right": jax.nn.softmax(
            jax.random.normal(ks[2], (B, Q, T), dtype=jnp.float32), axis=-1),
        "token_mask": (jax.random.uniform(ks[3], (B, T)) > 0.2).astype(jnp.float32),
        "pred_left_log_variance": 0.1 * jax.random.normal(ks[4], (B, Q, T), dtype=jnp.float32),
        "pred_right_log_variance": 0.1 * jax.random.normal(ks[5], (B, Q, T), dtype=jnp.float32),
        "pred_mean": 0.5 * jax.random.normal(ks[6], (B, Q, 2), dtype=jnp.float32),
        "pred_x_start": jnp.clip(
            0.7 * jax.random.normal(ks[7], (B, Q, 2), dtype=jnp.float32), -1.0, 1.0),
        "t": jnp.array([0, 3], dtype=jnp.int32),
    }
    targets = {
        "sizes": [2, 3],
        "labels": [jnp.array([3, 1], jnp.int32), jnp.array([2, 5, 4], jnp.int32)],
        "gt_left": [jnp.array([1, 4], jnp.int32), jnp.array([0, 7, 3], jnp.int32)],
        "gt_right": [jnp.array([2, 6], jnp.int32), jnp.array([1, 9, 5], jnp.int32)],
        "true_mean": 0.5 * jax.random.normal(ks[8], (B, Q, 2), dtype=jnp.float32),
        "true_log_variance_clipped": 0.1 * jax.random.normal(ks[9], (B, 1, 1), dtype=jnp.float32),
    }
    # Precomputed matcher assignments (per-batch (src_query_idx, tgt_idx)).
    indices = [
        (jnp.array([1, 4], jnp.int32), jnp.array([0, 1], jnp.int32)),
        (jnp.array([0, 2, 5], jnp.int32), jnp.array([2, 0, 1], jnp.int32)),
    ]

    losses, _ = aspect_detr_criterion_forward(
        outputs, targets, indices, aspect_type_count=C, nil_weight=NIL_WEIGHT)
    losses = jax.tree_util.tree_map(jax.block_until_ready, losses)

    ref = _reference_losses(outputs, targets, indices,
                            aspect_type_count=C, nil_weight=NIL_WEIGHT)
    for name in ("loss_ce", "loss_boundary", "loss_variance_and_mean"):
        got, want = float(losses[name]), float(ref[name])
        assert abs(got - want) <= 1e-4 + 1e-4 * abs(want), (name, got, want)

    print("KERNEL_OK")
</pallas_src>

<mosaic_0001>
module attributes {stable_mosaic.version = 11 : i64} {
  func.func @_ce_lane_major_kernel(%arg0: i32, %arg1: memref<8x16xf32, #tpu.memory_space<vmem>>, %arg2: memref<1x16xi32, #tpu.memory_space<vmem>>, %arg3: memref<8x1xf32, #tpu.memory_space<vmem>>, %arg4: memref<1x128xf32, #tpu.memory_space<vmem>>) attributes {dimension_semantics = [#tpu.dimension_semantics<parallel>], iteration_bounds = array<i64: 1>, scalar_prefetch = 0 : i64, scratch_operands = 0 : i64, tpu.core_type = #tpu.core_type<tc>, window_params = [{transform_indices = @transform_0, window_bounds = array<i64: 8, 16>}, {transform_indices = @transform_1, window_bounds = array<i64: 1, 16>}, {pipeline_mode = #tpu.pipeline_mode<synchronous>, transform_indices = @transform_2, window_bounds = array<i64: 8, 1>}, {transform_indices = @transform_3, window_bounds = array<i64: 1, 128>}]} {
    %c0 = arith.constant 0 : index
    %c0_0 = arith.constant 0 : index
    %0 = vector.load %arg1[%c0, %c0_0] : memref<8x16xf32, #tpu.memory_space<vmem>>, vector<8x16xf32>
    %c0_1 = arith.constant 0 : index
    %c0_2 = arith.constant 0 : index
    %1 = vector.load %arg2[%c0_1, %c0_2] : memref<1x16xi32, #tpu.memory_space<vmem>>, vector<1x16xi32>
    %c0_3 = arith.constant 0 : index
    %c0_4 = arith.constant 0 : index
    %2 = vector.load %arg3[%c0_3, %c0_4] : memref<8x1xf32, #tpu.memory_space<vmem>>, vector<8x1xf32>
    %cst = arith.constant dense<0xFF800000> : vector<16xf32>
    %3 = vector.multi_reduction <maximumf>, %0, %cst [0] : vector<8x16xf32> to vector<16xf32>
    %4 = vector.shape_cast %3 : vector<16xf32> to vector<1x16xf32>
    %5 = vector.broadcast %4 : vector<1x16xf32> to vector<8x16xf32>
    %6 = arith.subf %0, %5 : vector<8x16xf32>
    %7 = math.exp %6 : vector<8x16xf32>
    %cst_5 = arith.constant dense<0.000000e+00> : vector<16xf32>
    %8 = vector.multi_reduction <add>, %7, %cst_5 [0] : vector<8x16xf32> to vector<16xf32>
    %9 = vector.shape_cast %8 : vector<16xf32> to vector<1x16xf32>
    %10 = math.log %9 : vector<1x16xf32>
    %11 = arith.addf %4, %10 : vector<1x16xf32>
    %12 = tpu.iota {dimensions = array<i32: 0>} : vector<8x16xi32>
    %13 = vector.broadcast %1 : vector<1x16xi32> to vector<8x16xi32>
    %14 = arith.cmpi eq, %12, %13 : vector<8x16xi32>
    %cst_6 = arith.constant 0.000000e+00 : f32
    %15 = vector.broadcast %cst_6 : f32 to vector<8x16xf32>
    %16 = arith.select %14, %0, %15 : vector<8x16xi1>, vector<8x16xf32>
    %cst_7 = arith.constant dense<0.000000e+00> : vector<16xf32>
    %17 = vector.multi_reduction <add>, %16, %cst_7 [0] : vector<8x16xf32> to vector<16xf32>
    %18 = vector.shape_cast %17 : vector<16xf32> to vector<1x16xf32>
    %cst_8 = arith.constant 0.000000e+00 : f32
    %19 = vector.shape_cast %2 : vector<8x1xf32> to vector<8x1xf32>
    %20 = vector.broadcast %19 : vector<8x1xf32> to vector<8x16xf32>
    %21 = vector.broadcast %cst_8 : f32 to vector<8x16xf32>
    %22 = arith.select %14, %20, %21 : vector<8x16xi1>, vector<8x16xf32>
    %cst_9 = arith.constant dense<0.000000e+00> : vector<16xf32>
    %23 = vector.multi_reduction <add>, %22, %cst_9 [0] : vector<8x16xf32> to vector<16xf32>
    %24 = vector.shape_cast %23 : vector<16xf32> to vector<1x16xf32>
    %25 = arith.subf %11, %18 : vector<1x16xf32>
    %26 = arith.mulf %24, %25 : vector<1x16xf32>
    %c16_i32 = arith.constant 16 : i32
    %27 = arith.muli %arg0, %c16_i32 : i32
    %28 = tpu.iota {dimensions = array<i32: 1>} : vector<1x16xi32>
    %29 = vector.broadcast %27 : i32 to vector<1x16xi32>
    %30 = arith.addi %29, %28 : vector<1x16xi32>
    %c16_i32_10 = arith.constant 16 : i32
    %31 = vector.broadcast %c16_i32_10 : i32 to vector<1x16xi32>
    %32 = arith.cmpi slt, %30, %31 : vector<1x16xi32>
    %cst_11 = arith.constant 0.000000e+00 : f32
    %33 = vector.broadcast %cst_11 : f32 to vector<1x16xf32>
    %34 = arith.select %32, %26, %33 : vector<1x16xi1>, vector<1x16xf32>
    %35 = vector.shape_cast %34 : vector<1x16xf32> to vector<1x1x16xf32>
    %cst_12 = arith.constant dense<0.000000e+00> : vector<1xf32>
    %36 = vector.multi_reduction <add>, %35, %cst_12 [1, 2] : vector<1x1x16xf32> to vector<1xf32>
    %37 = vector.shape_cast %36 : vector<1xf32> to vector<1x1x1xf32>
    %38 = vector.extract %37[0, 0, 0] : f32 from vector<1x1x1xf32>
    %39 = vector.broadcast %38 : f32 to vector<1x128xf32>
    %c0_13 = arith.constant 0 : index
    %c0_14 = arith.constant 0 : index
    %40 = vector.load %arg4[%c0_13, %c0_14] : memref<1x128xf32, #tpu.memory_space<vmem>>, vector<1x128xf32>
    tpu.vector_store %arg4[%c0_13, %c0_14], %39 {strides = array<i32>} : memref<1x128xf32, #tpu.memory_space<vmem>>, vector<1x128xf32>,
    return
  }
  func.func @transform_0(%arg0: i32) -> (i32, i32) {
    %c0_i32 = arith.constant 0 : i32
    %c0_i32_0 = arith.constant 0 : i32
    return %c0_i32, %arg0 : i32, i32
  }
  func.func @transform_1(%arg0: i32) -> (i32, i32) {
    %c0_i32 = arith.constant 0 : i32
    %c0_i32_0 = arith.constant 0 : i32
    return %c0_i32, %arg0 : i32, i32
  }
  func.func @transform_2(%arg0: i32) -> (i32, i32) {
    %c0_i32 = arith.constant 0 : i32
    %c0_i32_0 = arith.constant 0 : i32
    %c0_i32_1 = arith.constant 0 : i32
    return %c0_i32, %c0_i32_0 : i32, i32
  }
  func.func @transform_3(%arg0: i32) -> (i32, i32) {
    %c0_i32 = arith.constant 0 : i32
    %c0_i32_0 = arith.constant 0 : i32
    return %c0_i32, %arg0 : i32, i32
  }
}

</mosaic_0001>

<llo_original>
// kernel: tpu_custom_call.1
$region0: #{tpu_custom_call.1}
  #allocation0 [shape = 'u32[]', space=smem, size = 0x4, offset = 0x4, fixed_abs, tag = 'smem constant byte address 0x4 - core index']
  #allocation1 [shape = 'u32[144,128]{1,0:T(1,128)}', space=vmem, size = 0x12000, scoped, tag = 'internal scratch']
  %s0 = inlined_call_operand.vmem [shape: f32[8,16], index: 0, kind: input, shape index: {}]
  %s1 = inlined_call_operand.vmem [shape: s32[1,16], index: 1, kind: input, shape index: {}]
  %s2 = inlined_call_operand.vmem [shape: f32[8,1], index: 2, kind: input, shape index: {}]
  %s3 = inlined_call_operand.hbm [shape: f32[1,128], index: 3, kind: output, shape index: {}]
  %s4 = sld [smem:[#allocation0]]
  $region22: #{tpu_custom_call.1} parent=0
    _
  %s6 = ssub.s32 1, %s4
  %s7 = scalar_select 0, %s6, %s4
  $region1: #{tpu_custom_call.1} parent=0
    #allocation2 [shape = 'u8[512]{0}', space=vmem, size = 0x400, scoped, tag = 'output window, operand 0, single buffered']
    #allocation3 [shape = 's32[1]{0}', space=sflag, size = 0x4, scoped, tag = 'scoped memory for tpu_custom_call.1']
    %8 = vsyncpa [#allocation3], 0
    // Predicated region
    $region2: #{tpu_custom_call.1} parent=1 // pred_check
      _
    $region3: #{tpu_custom_call.1} parent=1 // pred_check_branch
      %10 = sbr.rel (0) target = $region5
    $region4: #{tpu_custom_call.1} parent=1 // pred_region
      _
    $region5: #{tpu_custom_call.1} parent=1 // pred_fallthru
      _
    // Predicated region
    $region6: #{tpu_custom_call.1} parent=1 // pred_check
      _
    $region7: #{tpu_custom_call.1} parent=1 // pred_check_branch
      %12 = sbr.rel (0) target = $region9
    $region8: #{tpu_custom_call.1} parent=1 // pred_region
      _
    $region9: #{tpu_custom_call.1} parent=1 // pred_fallthru
      _
    // Predicated region
    $region10: #{tpu_custom_call.1} parent=1 // pred_check
      _
    $region11: #{tpu_custom_call.1} parent=1 // pred_check_branch
      %14 = sbr.rel (0) target = $region13
    $region12: #{tpu_custom_call.1} parent=1 // pred_region
      _
    $region13: #{tpu_custom_call.1} parent=1 // pred_fallthru
      _
    %v15 = vld [vmem:[%s0] sm:$0xff]
    %v16 = vld [vmem:[%s1] sm:$0x1]
    %v17 = vld [vmem:[%s2] sm:$0xff]
    %vm18 = vcmask 130048
    %v19 = vsel %vm18, %v15, -inf
    %v20 = vrot.slane %v19, 4
    %v21 = vmax.f32 %v19, %v20
    %v22 = vrot.slane %v21, 2
    %v23 = vmax.f32 %v21, %v22
    %v24 = vrot.slane %v23, 1
    %v25 = vmax.f32 %v23, %v24
    %v26 = vsub.f32 %v15, %v25
    %v27 = vmul.f32 %v26, 1.442695
    %v28 = vpow.pop %v27
    %v29 = vsel %vm18, %v28, 0.0
    %v30 = vrot.slane %v29, 4
    %v31 = vadd.f32 %v29, %v30
    %v32 = vrot.slane %v31, 2
    %v33 = vadd.f32 %v31, %v32
    %v34 = vrot.slane %v33, 1
    %v35 = vadd.f32 %v33, %v34
    %v36 = vlog2.pop %v35
    %v37 = vmul.f32 %v36, 0.6931472
    %v38 = vadd.f32 %v25, %v37
    %v39 = vlaneseq
    %v40 = vshrl.u32 %v39, 7
    %v41 = vlaneseq
    %v42 = vshrl.u32 %v41, 7
    %v43 = vsub.s32 0, %v42
    %v44 = vrot.slane %v16, %v43
    %vm45 = vcmp.eq.s32.totalorder %v40, %v44
    %v46 = vsel %vm45, %v15, 0.0
    %v47 = vsel %vm18, %v46, 0.0
    %v48 = vrot.slane %v47, 4
    %v49 = vadd.f32 %v47, %v48
    %v50 = vrot.slane %v49, 2
    %v51 = vadd.f32 %v49, %v50
    %v52 = vrot.slane %v51, 1
    %v53 = vadd.f32 %v51, %v52
    %55 = vset.pattern.permute.xlu0 0
    %56 = vperm.xlu0 %55, %v17
    %v57 = vpop.permute.xlu0 %56
    %v59 = vsel %vm45, %v57, 0.0
    %v60 = vsel %vm18, %v59, 0.0
    %v61 = vrot.slane %v60, 4
    %v62 = vadd.f32 %v60, %v61
    %v63 = vrot.slane %v62, 2
    %v64 = vadd.f32 %v62, %v63
    %v65 = vrot.slane %v64, 1
    %v66 = vadd.f32 %v64, %v65
    %v67 = vsub.f32 %v38, %v53
    %v68 = vmul.f32 %v66, %v67
    %s69 = smul.u32 0, 16
    %v70 = vlaneseq
    %v71 = vand.u32 %v70, 127
    %v72 = vstv %s69
    %v73 = vadd.s32 %v72, %v71
    %vm74 = vcmp.lt.s32.totalorder %v73, 16
    %v75 = vsel %vm74, %v68, 0.0
    %vm76 = vcmask 122880
    %v77 = vsel %vm76, %v75, 0.0
    %78 = vadd.xlane.f32.xlu0 %v77
    %v79 = vpop.xlane.xlu0 %78
    %v80 = vrot.slane %v79, 4
    %v81 = vadd.f32 %v79, %v80
    %v82 = vrot.slane %v81, 2
    %v83 = vadd.f32 %v81, %v82
    %v84 = vrot.slane %v83, 1
    %v85 = vadd.f32 %v83, %v84
    %s86 = vtos %v85
    %v87 = vstv %s86
    %88 = vst [vmem:[#allocation2] sm:$0x1] %v87
    // Predicated region
    $region14: #{tpu_custom_call.1} parent=1 // pred_check
      _
    $region15: #{tpu_custom_call.1} parent=1 // pred_check_branch
      %90 = sbr.rel (0) target = $region17
    $region16: #{tpu_custom_call.1} parent=1 // pred_region
      %s92 = ssub.s32 16, 16
      %93 = vsyncadd [#allocation3], %s92
      %s95 = sshll.u32 [#allocation2], 4
      %s96 = int_to_ptr.vmem [resolvable:$true] %s95
      %98 = dma.vmem_to_hbm [thread:$0]  %s96, 16, %s3, [#allocation3]
    $region17: #{tpu_custom_call.1} parent=1 // pred_fallthru
      _
    // Predicated region
    $region18: #{tpu_custom_call.1} parent=1 // pred_check
      _
    $region19: #{tpu_custom_call.1} parent=1 // pred_check_branch
      %100 = sbr.rel (0) target = $region21
    $region20: #{tpu_custom_call.1} parent=1 // pred_region
      %101 = dma.done [#allocation3], 16
    $region21: #{tpu_custom_call.1} parent=1 // pred_fallthru
      _
    %102 = vsyncpa [#allocation3], 1

</llo_original>
